<compile_context>
chip_gen: v6e
topology: v6e:2x2x1
jax: 0.10.0
libtpu: 0.0.40
codegen_flags: <defaults>
</compile_context>

<pallas_src>
import jax
import jax.numpy as jnp
from jax.experimental import pallas as pl
from jax.experimental.pallas import tpu as pltpu


# ----------------------------- Pallas kernel --------------------------------

def _neg_scale_kernel(neg_lam_ref, g_ref, o_ref):
    # grad_in = (-lambda) * grad_out   (neg_lam already negated in the wrapper)
    neg_lam = neg_lam_ref[0]                       # f32 scalar from SMEM
    g = g_ref[...]
    # f32 tiles multiply directly; bf16 tiles promote to f32 for the scale and
    # cast back (matches the PyTorch f32-lambda semantics).
    o_ref[...] = (g * neg_lam).astype(o_ref.dtype)


# ----------------------------- layout helpers -------------------------------

_SUBLANE_FOR_ITEMSIZE = {4: 8, 2: 16, 1: 32}       # f32 / bf16-f16 / int8-fp8

_BLOCK_BYTES = 4 * 1024 * 1024       # ~4 MiB per pipeline buffer
_MIN_SPLIT_BYTES = 2 * 1024 * 1024   # slabs >= this always get >= 2 grid blocks
_VMEM_LIMIT_BYTES = 40 * 1024 * 1024  # explicit scoped-VMEM budget


def _round_up(x, m):
    return ((x + m - 1) // m) * m


def _pick_lanes(n):
    """Widest lane count (multiple of 128) that exactly divides n, else None."""
    for cand in (1024, 512, 256, 128):
        if n % cand == 0:
            return cand
    return None


def _neg_scale_pallas(lambda_, g):
    """Return -lambda * g (same shape/dtype as g)."""
    orig_shape, orig_dtype = g.shape, g.dtype
    n = g.size
    itemsize = jnp.dtype(orig_dtype).itemsize
    neg_lam_f32 = -jnp.asarray(lambda_, dtype=jnp.float32)

    lanes = _pick_lanes(n) if n > 0 else None
    sublane = _SUBLANE_FOR_ITEMSIZE.get(itemsize)

    if lanes is None or sublane is None:
        # Ragged numel or unsupported dtype: plain XLA multiply is already
        # HBM-traffic optimal (and fusable) — no pad/slice round trips.
        return (neg_lam_f32 * g.astype(jnp.float32)).astype(orig_dtype)

    rows = n // lanes
    g2d = jnp.ravel(g).reshape(rows, lanes)        # bitcast-level reshape

    row_bytes = lanes * itemsize
    slab_bytes = rows * row_bytes

    # Row tile: ~4 MiB per buffer, multiple of the dtype's sublane count.
    tr = max(sublane, (_BLOCK_BYTES // row_bytes) // sublane * sublane)
    if rows <= tr:
        if slab_bytes >= _MIN_SPLIT_BYTES:
            # Keep >= 2 "parallel" blocks so both v7x TensorCores get work.
            tr = _round_up(pl.cdiv(rows, 2), sublane)
        else:
            tr = rows                              # tiny slab: one full block
    grid = (pl.cdiv(rows, tr),)

    neg_lam = neg_lam_f32.reshape((1,))

    y2d = pl.pallas_call(
        _neg_scale_kernel,
        out_shape=jax.ShapeDtypeStruct((rows, lanes), orig_dtype),
        grid_spec=pltpu.PrefetchScalarGridSpec(
            num_scalar_prefetch=0,
            grid=grid,
            in_specs=[
                pl.BlockSpec(memory_space=pltpu.SMEM),         # -lambda scalar
                pl.BlockSpec((tr, lanes), lambda i: (i, 0)),   # grad_out tile
            ],
            out_specs=pl.BlockSpec((tr, lanes), lambda i: (i, 0)),
        ),
        # Write grad_in over grad_out in HBM (elementwise, in-place safe).
        input_output_aliases={1: 0},
        cost_estimate=pl.CostEstimate(
            flops=rows * lanes,
            transcendentals=0,
            bytes_accessed=2 * rows * lanes * itemsize),
        compiler_params=pltpu.CompilerParams(
            dimension_semantics=("parallel",),
            vmem_limit_bytes=_VMEM_LIMIT_BYTES),
    )(neg_lam, g2d)

    return y2d.reshape(orig_shape)


# ------------------------- GradReverser (custom VJP) -------------------------

@jax.custom_vjp
def grad_reverser(x, lambda_):
    # Forward is identity (x.view_as(x) in PyTorch): zero data movement.
    return x


def _grad_reverser_fwd(x, lambda_):
    return x, lambda_


def _grad_reverser_bwd(lambda_, grad_output):
    # PyTorch backward: (-lambda * grad_output, None). lambda_ gets a zero
    # cotangent (it is a non-trainable scalar).
    return _neg_scale_pallas(lambda_, grad_output), jnp.zeros_like(lambda_)


grad_reverser.defvjp(_grad_reverser_fwd, _grad_reverser_bwd)


class GradReverser:
    """JAX/Pallas equivalent of the PyTorch GradReverser module."""

    def __init__(self, lambda_=0.0):
        self.lambda_ = jnp.asarray(lambda_, dtype=jnp.float32)

    def __call__(self, x):
        return grad_reverser(x, self.lambda_)


# ----------------------------------- main ------------------------------------

if __name__ == "__main__":
    key = jax.random.PRNGKey(0)
    module = GradReverser(lambda_=0.5)

    # 1) Small NCHW input (the module's typical ROI-feature input).
    x = jax.random.normal(key, (2, 4, 16, 16), dtype=jnp.float32)
    y = jax.block_until_ready(module(x))
    assert y.shape == x.shape and y.dtype == x.dtype
    assert bool(jnp.allclose(y, x)), "forward must be identity"
    gx = jax.block_until_ready(jax.grad(lambda a: jnp.sum(module(a)))(x))
    assert bool(jnp.allclose(gx, -0.5 * jnp.ones_like(x), atol=1e-6)), \
        "backward must be -lambda * grad_output"

    # 2) Larger tensor (4 MiB) -> >= 2-block parallel row grid (both v7x TCs).
    x2 = jax.random.normal(key, (16, 16, 32, 128), dtype=jnp.float32)
    gx2 = jax.block_until_ready(jax.grad(lambda a: jnp.sum(module(a)))(x2))
    assert bool(jnp.allclose(gx2, -0.5 * jnp.ones_like(x2), atol=1e-6))

    # 3) Ragged size -> plain-XLA fallback path (no pad/slice round trips).
    x3 = jax.random.normal(key, (3, 5, 7), dtype=jnp.float32)
    gx3 = jax.block_until_ready(jax.grad(lambda a: jnp.sum(module(a)))(x3))
    assert bool(jnp.allclose(gx3, -0.5 * jnp.ones_like(x3), atol=1e-6))

    # 4) bf16 gradients -> 16-sublane layout, scale via f32 promotion.
    x4 = jax.random.normal(key, (4, 8, 16, 128), dtype=jnp.bfloat16)
    gx4 = jax.block_until_ready(
        jax.grad(lambda a: jnp.sum(module(a).astype(jnp.float32)))(x4))
    assert gx4.dtype == jnp.bfloat16
    assert bool(jnp.allclose(gx4.astype(jnp.float32),
                             -0.5 * jnp.ones(x4.shape, jnp.float32), atol=1e-2))

    print("KERNEL_OK")
</pallas_src>

<mosaic_0001>
module attributes {stable_mosaic.version = 11 : i64} {
  func.func @_neg_scale_kernel(%arg0: i32, %arg1: memref<1xf32, #tpu.memory_space<smem>>, %arg2: memref<2x1024xf32, #tpu.memory_space<vmem>>, %arg3: memref<2x1024xf32, #tpu.memory_space<vmem>>) attributes {dimension_semantics = [#tpu.dimension_semantics<parallel>], iteration_bounds = array<i64: 1>, scalar_prefetch = 0 : i64, scratch_operands = 0 : i64, tpu.core_type = #tpu.core_type<tc>, window_params = [{transform_indices = @transform_0, window_bounds = array<i64: 1>}, {transform_indices = @transform_1, window_bounds = array<i64: 2, 1024>}, {transform_indices = @transform_2, window_bounds = array<i64: 2, 1024>}]} {
    %c0 = arith.constant 0 : index
    %0 = memref.load %arg1[%c0] : memref<1xf32, #tpu.memory_space<smem>>
    %c0_0 = arith.constant 0 : index
    %c0_1 = arith.constant 0 : index
    %1 = vector.load %arg2[%c0_0, %c0_1] : memref<2x1024xf32, #tpu.memory_space<vmem>>, vector<2x1024xf32>
    %2 = vector.broadcast %0 : f32 to vector<2x1024xf32>
    %3 = arith.mulf %1, %2 : vector<2x1024xf32>
    %c0_2 = arith.constant 0 : index
    %c0_3 = arith.constant 0 : index
    %4 = vector.load %arg3[%c0_2, %c0_3] : memref<2x1024xf32, #tpu.memory_space<vmem>>, vector<2x1024xf32>
    tpu.vector_store %arg3[%c0_2, %c0_3], %3 {strides = array<i32>} : memref<2x1024xf32, #tpu.memory_space<vmem>>, vector<2x1024xf32>,
    return
  }
  func.func @transform_0(%arg0: i32) -> i32 {
    %c0_i32 = arith.constant 0 : i32
    %c0_i32_0 = arith.constant 0 : i32
    return %c0_i32 : i32
  }
  func.func @transform_1(%arg0: i32) -> (i32, i32) {
    %c0_i32 = arith.constant 0 : i32
    %c0_i32_0 = arith.constant 0 : i32
    return %arg0, %c0_i32 : i32, i32
  }
  func.func @transform_2(%arg0: i32) -> (i32, i32) {
    %c0_i32 = arith.constant 0 : i32
    %c0_i32_0 = arith.constant 0 : i32
    return %arg0, %c0_i32 : i32, i32
  }
}

</mosaic_0001>

<llo_original>
// kernel: tpu_custom_call.1
$region0: #{tpu_custom_call.1}
  #allocation0 [shape = 'u32[]', space=smem, size = 0x4, offset = 0x4, fixed_abs, tag = 'smem constant byte address 0x4 - core index']
  #allocation1 [shape = 'u32[144,128]{1,0:T(1,128)}', space=vmem, size = 0x12000, scoped, tag = 'internal scratch']
  #allocation2 [shape = 'f32[1]{0:T(128)S(6)}', space=smem, size = 0x200, scoped, tag = 'scoped memory for tpu_custom_call.1']
  %s0 = inlined_call_operand.<no memory space> [shape: f32[1], index: 0, kind: input, shape index: {}]
  %s1 = inlined_call_operand.hbm [shape: f32[2,1024], index: 1, kind: input, shape index: {}, may-alias: {1,2}]
  %s2 = inlined_call_operand.hbm [shape: f32[2,1024], index: 2, kind: output, shape index: {}, may-alias: {1,2}]
  %s3 = sld [smem:[#allocation0]]
  $region22: #{tpu_custom_call.1} parent=0
    _
  %s5 = ssub.s32 1, %s3
  %s6 = scalar_select 0, %s5, %s3
  %7 = sst [smem:[#allocation2]] %s0
  $region1: #{tpu_custom_call.1} parent=0
    #allocation3 [shape = 'u8[8192]{0}', space=vmem, size = 0x2000, scoped, tag = 'input window, operand 1, single buffered']
    #allocation4 [shape = 's32[1]{0}', space=sflag, size = 0x4, scoped, tag = 'scoped memory for tpu_custom_call.1']
    #allocation5 [shape = 's32[1]{0}', space=sflag, size = 0x4, scoped, tag = 'scoped memory for tpu_custom_call.1']
    #allocation6 [shape = 'u8[8192]{0}', space=vmem, size = 0x2000, scoped, tag = 'output window, operand 0, single buffered']
    %8 = vsyncpa [#allocation4], 0
    %9 = vsyncpa [#allocation5], 0
    // Predicated region
    $region2: #{tpu_custom_call.1} parent=1 // pred_check
      _
    $region3: #{tpu_custom_call.1} parent=1 // pred_check_branch
      %11 = sbr.rel (0) target = $region5
    $region4: #{tpu_custom_call.1} parent=1 // pred_region
      _
    $region5: #{tpu_custom_call.1} parent=1 // pred_fallthru
      _
    // Predicated region
    $region6: #{tpu_custom_call.1} parent=1 // pred_check
      _
    $region7: #{tpu_custom_call.1} parent=1 // pred_check_branch
      %13 = sbr.rel (0) target = $region9
    $region8: #{tpu_custom_call.1} parent=1 // pred_region
      %s15 = ssub.s32 256, 256
      %16 = vsyncadd [#allocation4], %s15
      %s18 = sshll.u32 [#allocation3], 4
      %s19 = int_to_ptr.vmem [resolvable:$true] %s18
      %21 = dma.hbm_to_vmem [thread:$0]  %s1, 256, %s19, [#allocation4]
    $region9: #{tpu_custom_call.1} parent=1 // pred_fallthru
      _
    // Predicated region
    $region10: #{tpu_custom_call.1} parent=1 // pred_check
      _
    $region11: #{tpu_custom_call.1} parent=1 // pred_check_branch
      %23 = sbr.rel (0) target = $region13
    $region12: #{tpu_custom_call.1} parent=1 // pred_region
      %24 = dma.done [#allocation4], 256
    $region13: #{tpu_custom_call.1} parent=1 // pred_fallthru
      _
    %s25 = sld [smem:[#allocation2]]
    %v26 = vld [vmem:[#allocation3] sm:$0xff]
    %v27 = vld [vmem:[#allocation3 + $0x8] sm:$0xff]
    %v28 = vstv %s25
    %v29 = vmul.f32 %v26, %v28
    %v30 = vmul.f32 %v27, %v28
    %31 = vst [vmem:[#allocation6] sm:$0xff] %v29
    %32 = vst [vmem:[#allocation6 + $0x8] sm:$0xff] %v30
    // Predicated region
    $region14: #{tpu_custom_call.1} parent=1 // pred_check
      _
    $region15: #{tpu_custom_call.1} parent=1 // pred_check_branch
      %34 = sbr.rel (0) target = $region17
    $region16: #{tpu_custom_call.1} parent=1 // pred_region
      %s36 = ssub.s32 256, 256
      %37 = vsyncadd [#allocation5], %s36
      %s39 = sshll.u32 [#allocation6], 4
      %s40 = int_to_ptr.vmem [resolvable:$true] %s39
      %42 = dma.vmem_to_hbm [thread:$0]  %s40, 256, %s2, [#allocation5]
    $region17: #{tpu_custom_call.1} parent=1 // pred_fallthru
      _
    // Predicated region
    $region18: #{tpu_custom_call.1} parent=1 // pred_check
      _
    $region19: #{tpu_custom_call.1} parent=1 // pred_check_branch
      %44 = sbr.rel (0) target = $region21
    $region20: #{tpu_custom_call.1} parent=1 // pred_region
      %45 = dma.done [#allocation5], 256
    $region21: #{tpu_custom_call.1} parent=1 // pred_fallthru
      _
    %46 = vsyncpa [#allocation4], 1
    %47 = vsyncpa [#allocation5], 1

</llo_original>
